<compile_context>
chip_gen: v7x
topology: tpu7x:2x2x1
jax: 0.10.0
libtpu: 0.0.40
codegen_flags: <defaults>
</compile_context>

<pallas_src>
import functools

import jax
import jax.numpy as jnp
from jax.experimental import pallas as pl
from jax.experimental.pallas import tpu as pltpu

C_LOGIT = 10.0      # AttentionPointer tanh-clipping constant (use_tanh=True)


# ----------------------------------------------------------------------------
# Hardware-aware helpers
# ----------------------------------------------------------------------------
def _tpu_vmem_bytes():
    try:
        return int(pltpu.get_tpu_info().vmem_capacity_bytes)
    except Exception:
        return 128 << 20        # v5e/v6e physical VMEM


def _vmem_limit_bytes():
    # Raise the scoped VMEM limit so bigger batch tiles are legal (v6e), but never
    # beyond half the physical capacity (safe on v7x's 64 MiB as well).
    return max(32 << 20, _tpu_vmem_bytes() // 2)


def _pick_batch_tile(B, S, H, e_bytes=4, min_blocks=2):
    """Largest batch tile that (a) divides B, (b) is a multiple of 8 (sublane rule),
    (c) keeps the e double-buffer + ~3 f32 attention temporaries within ~1/4 of VMEM,
    and (d) leaves >= min_blocks grid blocks so v7x's two TensorCores both get work."""
    budget = _tpu_vmem_bytes() // 4
    cands = [bt for bt in range(8, B + 1, 8) if B % bt == 0]
    if not cands:
        return B
    per_bt = S * H * (2 * e_bytes + 3 * 4)
    fits = [bt for bt in cands if bt * per_bt <= budget] or cands[:1]
    multi = [bt for bt in fits if B // bt >= min_blocks]
    return max(multi) if multi else max(fits)


# ----------------------------------------------------------------------------
# Kernel 1: step-invariant reference projection  e = x @ Wr + br
# (operates on a [B*S, H] view -> pure 2-D matmul, no in-kernel reshape)
# ----------------------------------------------------------------------------
def project_ref_kernel(x_ref, wr_ref, br_ref, e_ref):
    e = jnp.dot(x_ref[...], wr_ref[...], preferred_element_type=jnp.float32) + br_ref[...]
    e_ref[...] = e.astype(e_ref.dtype)


# ----------------------------------------------------------------------------
# Kernel 2: one decoder step (2-layer GRU cell + pointer attention + greedy pick)
# ----------------------------------------------------------------------------
def decoder_step_kernel(lastx_ref, h_ref, e_ref, mask_ref,
                        wih0_ref, whh0_ref, bih0_ref, bhh0_ref,
                        wih1_ref, whh1_ref, bih1_ref, bhh1_ref,
                        wq_ref, bq_ref, v_ref,
                        idx_ref, prob_ref, hout_ref,
                        *, fused_gates, lane_dense_out):
    H = lastx_ref.shape[-1]
    S = e_ref.shape[0] if lane_dense_out else e_ref.shape[1]

    def gru_cell(inp, h_prev, wih, whh, bih, bhh):
        if fused_gates:
            # H % 128 == 0: 2 wide MXU pushes per cell (N = 3H), lane-aligned gate slices.
            gi = jnp.dot(inp, wih[...], preferred_element_type=jnp.float32) + bih[...]
            gh = jnp.dot(h_prev, whh[...], preferred_element_type=jnp.float32) + bhh[...]
            gi_r, gi_z, gi_n = gi[:, :H], gi[:, H:2 * H], gi[:, 2 * H:]
            gh_r, gh_z, gh_n = gh[:, :H], gh[:, H:2 * H], gh[:, 2 * H:]
        else:
            # tiny / unaligned H: per-gate [3,H,H] weights so no unaligned lane slices.
            def gate(i):
                return (jnp.dot(inp, wih[i], preferred_element_type=jnp.float32) + bih[i],
                        jnp.dot(h_prev, whh[i], preferred_element_type=jnp.float32) + bhh[i])
            (gi_r, gh_r), (gi_z, gh_z), (gi_n, gh_n) = gate(0), gate(1), gate(2)
        r = jax.nn.sigmoid(gi_r + gh_r)
        z = jax.nn.sigmoid(gi_z + gh_z)
        n = jnp.tanh(gi_n + r * gh_n)
        return (1.0 - z) * n + z * h_prev

    # --- 2-layer GRU, single time step ---
    h1l0 = gru_cell(lastx_ref[...], h_ref[0], wih0_ref, whh0_ref, bih0_ref, bhh0_ref)
    h1l1 = gru_cell(h1l0, h_ref[1], wih1_ref, whh1_ref, bih1_ref, bhh1_ref)
    hout_ref[0] = h1l0
    hout_ref[1] = h1l1

    # --- pointer attention over the precomputed reference projection e ---
    q = jnp.dot(h1l1, wq_ref[...], preferred_element_type=jnp.float32) + bq_ref[...]   # [bt,H]
    e = e_ref[...]
    v3 = v_ref[...][None]                                                               # [1,1,H]
    if lane_dense_out:
        # e: [S,bt,H], batch on the 128-lane axis -> lane-dense logits/argmax/stores.
        t = jnp.tanh(q[None, :, :].astype(e.dtype) + e)                                 # [S,bt,H]
        ax = 0
    else:
        t = jnp.tanh(q[:, None, :].astype(e.dtype) + e)                                 # [bt,S,H]
        ax = 1
    u = jnp.sum(t.astype(jnp.float32) * v3, axis=-1)                                    # f32 accum
    logits = C_LOGIT * jnp.tanh(u)                                                       # use_tanh
    masked = jnp.where(mask_ref[...] > 0.5, -jnp.inf, logits)

    # --- greedy pick directly on masked logits (softmax is monotone) ---
    node = jax.lax.broadcasted_iota(jnp.int32, masked.shape, ax)
    mmax = jnp.max(masked, axis=ax, keepdims=True)
    idx = jnp.min(jnp.where(masked == mmax, node, S), axis=ax, keepdims=True)  # first argmax
    idx_ref[...] = idx.astype(jnp.int32)

    # the greedy pick IS the row max => its softmax prob is exactly 1/denom
    denom = jnp.sum(jnp.exp(masked - mmax), axis=ax, keepdims=True)
    prob_ref[...] = pl.reciprocal(denom, approx=False)   # approx=True OK if not fed to a loss


# ----------------------------------------------------------------------------
# Params (PyTorch-default-style uniform init; layout depends on lane alignment)
# ----------------------------------------------------------------------------
def init_params(key, hidden_dim):
    H = hidden_dim
    bound = 1.0 / (H ** 0.5)
    ks = jax.random.split(key, 13)
    u = lambda k, shape: jax.random.uniform(k, shape, jnp.float32, -bound, bound)
    fused = (H % 128 == 0)
    gw = (lambda k: u(k, (H, 3 * H))) if fused else (lambda k: u(k, (3, H, H)))
    gb = (lambda k: u(k, (1, 3 * H))) if fused else (lambda k: u(k, (3, 1, H)))
    return {
        # 2-layer GRU, gate order (r, z, n); weights stored transposed for `act @ W`.
        'wih0': gw(ks[0]), 'whh0': gw(ks[1]), 'bih0': gb(ks[2]), 'bhh0': gb(ks[3]),
        'wih1': gw(ks[4]), 'whh1': gw(ks[5]), 'bih1': gb(ks[6]), 'bhh1': gb(ks[7]),
        # pointer: project_query Linear(H,H), project_ref Conv1d(H,H,1), v[H]
        'wq': u(ks[8], (H, H)), 'bq': u(ks[9], (1, H)),
        'wr': u(ks[10], (H, H)), 'br': u(ks[11], (1, H)),
        'v': u(ks[12], (1, H)),
        # NOTE: self.h / self.W from __init__ are unused in forward(); omitted.
    }


# ----------------------------------------------------------------------------
# Wrappers
# ----------------------------------------------------------------------------
def precompute_ref(params, x, *, bt=None, e_dtype=jnp.float32):
    """Step-invariant pointer 'reference' projection e = x @ Wr + br  -> [B,S,H].
       Use e_dtype=jnp.bfloat16 on v6e/v7x to halve the per-step HBM re-read of e."""
    B, S, H = x.shape
    if bt is None:
        bt = _pick_batch_tile(B, S, H, e_bytes=jnp.dtype(e_dtype).itemsize)
    assert B % bt == 0
    rows = bt * S
    e2 = pl.pallas_call(
        project_ref_kernel,
        out_shape=jax.ShapeDtypeStruct((B * S, H), e_dtype),
        grid_spec=pltpu.PrefetchScalarGridSpec(
            num_scalar_prefetch=0, grid=(B // bt,),
            in_specs=[pl.BlockSpec((rows, H), lambda b: (b, 0)),
                      pl.BlockSpec((H, H), lambda b: (0, 0)),
                      pl.BlockSpec((1, H), lambda b: (0, 0))],
            out_specs=pl.BlockSpec((rows, H), lambda b: (b, 0))),
        compiler_params=pltpu.CompilerParams(
            dimension_semantics=("parallel",),
            vmem_limit_bytes=_vmem_limit_bytes()),
    )(x.reshape(B * S, H), params['wr'], params['br'])
    return e2.reshape(B, S, H)


def sequencial_decoder(params, x, last_node, hidden, mask, e=None, *,
                       bt=None, e_dtype=jnp.float32, strategy='greedy'):
    """x: [B,S,H] f32, last_node: [B,1] i32, hidden: [2,B,H] f32, mask: [B,S] bool.
       Returns (idx [B,1] i32, prob [B] f32, hidden [2,B,H] f32)."""
    if strategy != 'greedy':
        # TODO(synk): 'sample' strategy (torch.multinomial) not implemented.
        raise NotImplementedError("only strategy='greedy' is implemented")
    B, S, H = x.shape
    if bt is None:
        bt = _pick_batch_tile(B, S, H, e_bytes=jnp.dtype(e_dtype).itemsize)
    assert B % bt == 0, "batch tile must divide batch"
    if e is None:
        e = precompute_ref(params, x, bt=bt, e_dtype=e_dtype)

    fused = (H % 128 == 0)        # wide fused-gate MXU path (2 pushes per GRU cell)
    lane_dense = (bt % 128 == 0)  # batch on the 128-lane axis for mask/logits/idx/prob

    # TODO(synk): for rollouts, fold this gather in-kernel (scalar-prefetch last_node)
    # and alias hidden in/out with input_output_aliases.
    last_x = jnp.take_along_axis(x, last_node.reshape(B, 1, 1), axis=1)[:, 0, :]
    mask_f = mask.astype(jnp.float32)

    if fused:
        w_gru = pl.BlockSpec((H, 3 * H), lambda b: (0, 0))
        b_gru = pl.BlockSpec((1, 3 * H), lambda b: (0, 0))
    else:
        w_gru = pl.BlockSpec((3, H, H), lambda b: (0, 0, 0))
        b_gru = pl.BlockSpec((3, 1, H), lambda b: (0, 0, 0))
    w_2d = pl.BlockSpec((H, H), lambda b: (0, 0))
    b_2d = pl.BlockSpec((1, H), lambda b: (0, 0))

    if lane_dense:
        e_in = jnp.transpose(e, (1, 0, 2))            # [S,B,H] (step-invariant layout)
        m_in = jnp.transpose(mask_f)                  # [S,B]
        e_spec = pl.BlockSpec((S, bt, H), lambda b: (0, b, 0))
        m_spec = pl.BlockSpec((S, bt), lambda b: (0, b))
        io_shape, io_spec = (1, B), pl.BlockSpec((1, bt), lambda b: (0, b))
    else:
        e_in, m_in = e, mask_f
        e_spec = pl.BlockSpec((bt, S, H), lambda b: (b, 0, 0))
        m_spec = pl.BlockSpec((bt, S), lambda b: (b, 0))
        io_shape, io_spec = (B, 1), pl.BlockSpec((bt, 1), lambda b: (b, 0))

    kern = functools.partial(decoder_step_kernel,
                             fused_gates=fused, lane_dense_out=lane_dense)
    out_shapes = (jax.ShapeDtypeStruct(io_shape, jnp.int32),
                  jax.ShapeDtypeStruct(io_shape, jnp.float32),
                  jax.ShapeDtypeStruct((2, B, H), jnp.float32))

    idx, prob, hidden_out = pl.pallas_call(
        kern,
        out_shape=out_shapes,
        grid_spec=pltpu.PrefetchScalarGridSpec(
            num_scalar_prefetch=0, grid=(B // bt,),
            in_specs=[
                pl.BlockSpec((bt, H), lambda b: (b, 0)),        # last_x
                pl.BlockSpec((2, bt, H), lambda b: (0, b, 0)),  # hidden in (2 layers)
                e_spec,                                         # precomputed e
                m_spec,                                         # mask
                w_gru, w_gru, b_gru, b_gru,                     # GRU layer 0
                w_gru, w_gru, b_gru, b_gru,                     # GRU layer 1
                w_2d, b_2d, b_2d,                               # wq, bq, v
            ],
            out_specs=(io_spec, io_spec,
                       pl.BlockSpec((2, bt, H), lambda b: (0, b, 0)))),
        compiler_params=pltpu.CompilerParams(
            dimension_semantics=("parallel",),
            vmem_limit_bytes=_vmem_limit_bytes()),
    )(last_x, hidden, e_in, m_in,
      params['wih0'], params['whh0'], params['bih0'], params['bhh0'],
      params['wih1'], params['whh1'], params['bih1'], params['bhh1'],
      params['wq'], params['bq'], params['v'])

    return idx.reshape(B, 1), prob.reshape(B), hidden_out


# ----------------------------------------------------------------------------
# Pure-JAX reference (HIGHEST matmul precision) for correctness checking
# ----------------------------------------------------------------------------
_HI = jax.lax.Precision.HIGHEST


def _gru_cell_ref(inp, h_prev, wih, whh, bih, bhh, H):
    if wih.ndim == 2:                                 # fused [H,3H]
        gi = jnp.dot(inp, wih, precision=_HI) + bih
        gh = jnp.dot(h_prev, whh, precision=_HI) + bhh
        gi_r, gi_z, gi_n = gi[:, :H], gi[:, H:2 * H], gi[:, 2 * H:]
        gh_r, gh_z, gh_n = gh[:, :H], gh[:, H:2 * H], gh[:, 2 * H:]
    else:                                             # split [3,H,H]
        gi_r = jnp.dot(inp, wih[0], precision=_HI) + bih[0]
        gh_r = jnp.dot(h_prev, whh[0], precision=_HI) + bhh[0]
        gi_z = jnp.dot(inp, wih[1], precision=_HI) + bih[1]
        gh_z = jnp.dot(h_prev, whh[1], precision=_HI) + bhh[1]
        gi_n = jnp.dot(inp, wih[2], precision=_HI) + bih[2]
        gh_n = jnp.dot(h_prev, whh[2], precision=_HI) + bhh[2]
    r = jax.nn.sigmoid(gi_r + gh_r)
    z = jax.nn.sigmoid(gi_z + gh_z)
    n = jnp.tanh(gi_n + r * gh_n)
    return (1.0 - z) * n + z * h_prev


def _reference(params, x, last_node, hidden, mask):
    B, S, H = x.shape
    last_x = jnp.take_along_axis(x, last_node.reshape(B, 1, 1), axis=1)[:, 0, :]
    h1l0 = _gru_cell_ref(last_x, hidden[0], params['wih0'], params['whh0'],
                         params['bih0'], params['bhh0'], H)
    h1l1 = _gru_cell_ref(h1l0, hidden[1], params['wih1'], params['whh1'],
                         params['bih1'], params['bhh1'], H)
    q = jnp.dot(h1l1, params['wq'], precision=_HI) + params['bq']
    e = jnp.einsum('bsh,hk->bsk', x, params['wr'], precision=_HI) + params['br']
    u = jnp.sum(jnp.tanh(q[:, None, :] + e) * params['v'][None], axis=-1)
    logits = C_LOGIT * jnp.tanh(u)
    masked = jnp.where(mask, -jnp.inf, logits)
    probs = jax.nn.softmax(masked, axis=1)
    idx = jnp.argmax(masked, axis=1)
    prob = jnp.take_along_axis(probs, idx[:, None], axis=1)[:, 0]
    return idx[:, None].astype(jnp.int32), prob, jnp.stack([h1l0, h1l1], 0), masked


# ----------------------------------------------------------------------------
# Demo / self-test
# ----------------------------------------------------------------------------
def _run_case(B, S, H, bt, e_dtype):
    key = jax.random.PRNGKey(0)
    kp, kx, kh, kn = jax.random.split(key, 4)
    params = init_params(kp, H)
    x = jax.random.normal(kx, (B, S, H), jnp.float32)
    hidden = jax.random.normal(kh, (2, B, H), jnp.float32)
    last_node = jax.random.randint(kn, (B, 1), 0, S, jnp.int32)
    mask = jnp.zeros((B, S), jnp.bool_).at[jnp.arange(B), last_node[:, 0]].set(True)

    e = precompute_ref(params, x, bt=bt, e_dtype=e_dtype)     # once per rollout
    idx, prob, hidden_out = sequencial_decoder(
        params, x, last_node, hidden, mask, e=e, bt=bt, strategy='greedy')
    jax.block_until_ready((idx, prob, hidden_out))

    idx_r, prob_r, hid_r, ml_r = _reference(params, x, last_node, hidden, mask)
    assert idx.shape == (B, 1) and prob.shape == (B,) and hidden_out.shape == (2, B, H)
    assert bool(jnp.all(jnp.isfinite(prob)))
    assert bool(jnp.all((prob > 0.0) & (prob <= 1.0 + 1e-5)))
    assert bool(jnp.all(idx[:, 0] != last_node[:, 0]))         # masked node never picked
    rows = jnp.arange(B)
    # greedy pick agrees with the reference except at numerical near-ties in the logits
    gap = ml_r[rows, idx_r[:, 0]] - ml_r[rows, idx[:, 0]]
    tie_tol = 0.3 if e_dtype == jnp.bfloat16 else 0.1
    assert bool(jnp.all((idx[:, 0] == idx_r[:, 0]) | (gap < tie_tol)))
    ptol = 0.2 if e_dtype == jnp.bfloat16 else 0.1
    patol = 0.05 if e_dtype == jnp.bfloat16 else 0.02
    assert bool(jnp.allclose(prob, prob_r, atol=patol, rtol=ptol))
    assert bool(jnp.allclose(hidden_out, hid_r, atol=1e-2, rtol=1e-2))


if __name__ == "__main__":
    # (A) tiny demo shape: H=32 -> per-gate GRU path, bt=8 -> grid=(2,) (both v7x TCs busy)
    _run_case(B=16, S=8, H=32, bt=8, e_dtype=jnp.float32)
    # (B) lane-aligned shape: H=128 -> fused-gate MXU path, bt=128 -> lane-dense idx/prob
    _run_case(B=256, S=8, H=128, bt=128, e_dtype=jnp.float32)
    # (C) bf16 e / bf16 attention tanh (recommended on v6e/v7x; keep f32 on v5e)
    _run_case(B=16, S=8, H=32, bt=8, e_dtype=jnp.bfloat16)
    print("KERNEL_OK")
</pallas_src>

<mosaic_0001>
module attributes {stable_mosaic.version = 11 : i64} {
  func.func @project_ref_kernel(%arg0: i32, %arg1: memref<64x32xf32, #tpu.memory_space<vmem>>, %arg2: memref<32x32xf32, #tpu.memory_space<vmem>>, %arg3: memref<1x32xf32, #tpu.memory_space<vmem>>, %arg4: memref<64x32xf32, #tpu.memory_space<vmem>>) attributes {dimension_semantics = [#tpu.dimension_semantics<parallel>], iteration_bounds = array<i64: 2>, scalar_prefetch = 0 : i64, scratch_operands = 0 : i64, tpu.core_type = #tpu.core_type<tc>, window_params = [{transform_indices = @transform_0, window_bounds = array<i64: 64, 32>}, {pipeline_mode = #tpu.pipeline_mode<synchronous>, transform_indices = @transform_1, window_bounds = array<i64: 32, 32>}, {pipeline_mode = #tpu.pipeline_mode<synchronous>, transform_indices = @transform_2, window_bounds = array<i64: 1, 32>}, {transform_indices = @transform_3, window_bounds = array<i64: 64, 32>}]} {
    %c0 = arith.constant 0 : index
    %c0_0 = arith.constant 0 : index
    %0 = vector.load %arg1[%c0, %c0_0] : memref<64x32xf32, #tpu.memory_space<vmem>>, vector<64x32xf32>
    %c0_1 = arith.constant 0 : index
    %c0_2 = arith.constant 0 : index
    %1 = vector.load %arg2[%c0_1, %c0_2] : memref<32x32xf32, #tpu.memory_space<vmem>>, vector<32x32xf32>
    %cst = arith.constant dense<0.000000e+00> : vector<64x32xf32>
    %2 = tpu.matmul %0, %1, %cst {dimension_numbers = #tpu.dot_dimension_numbers<[1], [0], [0], [1], [0, 0, 1, 1], [], []>} : vector<64x32xf32>, vector<32x32xf32>, vector<64x32xf32> -> vector<64x32xf32>
    %c0_3 = arith.constant 0 : index
    %c0_4 = arith.constant 0 : index
    %3 = vector.load %arg3[%c0_3, %c0_4] : memref<1x32xf32, #tpu.memory_space<vmem>>, vector<1x32xf32>
    %4 = vector.broadcast %3 : vector<1x32xf32> to vector<64x32xf32>
    %5 = arith.addf %2, %4 : vector<64x32xf32>
    %c0_5 = arith.constant 0 : index
    %c0_6 = arith.constant 0 : index
    %6 = vector.load %arg4[%c0_5, %c0_6] : memref<64x32xf32, #tpu.memory_space<vmem>>, vector<64x32xf32>
    tpu.vector_store %arg4[%c0_5, %c0_6], %5 {strides = array<i32>} : memref<64x32xf32, #tpu.memory_space<vmem>>, vector<64x32xf32>,
    return
  }
  func.func @transform_0(%arg0: i32) -> (i32, i32) {
    %c0_i32 = arith.constant 0 : i32
    %c0_i32_0 = arith.constant 0 : i32
    return %arg0, %c0_i32 : i32, i32
  }
  func.func @transform_1(%arg0: i32) -> (i32, i32) {
    %c0_i32 = arith.constant 0 : i32
    %c0_i32_0 = arith.constant 0 : i32
    %c0_i32_1 = arith.constant 0 : i32
    return %c0_i32, %c0_i32_0 : i32, i32
  }
  func.func @transform_2(%arg0: i32) -> (i32, i32) {
    %c0_i32 = arith.constant 0 : i32
    %c0_i32_0 = arith.constant 0 : i32
    %c0_i32_1 = arith.constant 0 : i32
    return %c0_i32, %c0_i32_0 : i32, i32
  }
  func.func @transform_3(%arg0: i32) -> (i32, i32) {
    %c0_i32 = arith.constant 0 : i32
    %c0_i32_0 = arith.constant 0 : i32
    return %arg0, %c0_i32 : i32, i32
  }
}

</mosaic_0001>

<llo_original>
// kernel: tpu_custom_call.1
$region0: #{tpu_custom_call.1}
  #allocation0 [shape = 'u32[]', space=smem, size = 0x4, offset = 0x4, fixed_abs, tag = 'smem constant byte address 0x4 - core index']
  #allocation1 [shape = 'u32[144,128]{1,0:T(1,128)}', space=vmem, size = 0x12000, scoped, tag = 'internal scratch']
  %s0 = inlined_call_operand.hbm [shape: f32[128,32], index: 0, kind: input, shape index: {}]
  %s1 = inlined_call_operand.hbm [shape: f32[32,32], index: 1, kind: input, shape index: {}]
  %s2 = inlined_call_operand.hbm [shape: f32[1,32], index: 2, kind: input, shape index: {}]
  %s3 = inlined_call_operand.hbm [shape: f32[128,32], index: 3, kind: output, shape index: {}]
  %s4 = sld [smem:[#allocation0]]
  $region57: #{tpu_custom_call.1} parent=0
    _
  %s6 = ssub.s32 1, %s4
  %s7 = scalar_select 0, %s6, %s4
  $region1: #{tpu_custom_call.1} parent=0
    #allocation2 [shape = 'u8[65536]{0}', space=vmem, size = 0x10000, scoped, tag = 'input window, operand 0']
    #allocation3 [shape = 's32[2]{0}', space=sflag, size = 0x8, scoped, tag = 'scoped memory for tpu_custom_call.1']
    #allocation4 [shape = 's32[2]{0}', space=sflag, size = 0x8, scoped, tag = 'scoped memory for tpu_custom_call.1']
    #allocation5 [shape = 'u8[16384]{0}', space=vmem, size = 0x4000, scoped, tag = 'input window, operand 1, single buffered']
    #allocation6 [shape = 's32[1]{0}', space=sflag, size = 0x4, scoped, tag = 'scoped memory for tpu_custom_call.1']
    #allocation7 [shape = 'u8[512]{0}', space=vmem, size = 0x400, scoped, tag = 'input window, operand 2, single buffered']
    #allocation8 [shape = 'u8[65536]{0}', space=vmem, size = 0x10000, scoped, tag = 'output window, operand 0']
    %8 = vsyncpa [#allocation3], 0
    %s9 = scalar_lea.sflag [#allocation3], 1
    %10 = vsyncpa %s9, 0
    %11 = vsyncpa [#allocation6], 0
    %12 = vsyncpa [#allocation4], 0
    %s13 = scalar_lea.sflag [#allocation4], 1
    %14 = vsyncpa %s13, 0
    loop: start=0, step=1, limit=4
    $region2: #{tpu_custom_call.1} parent=1 // loop_pre_header
      _
    $region3: #{tpu_custom_call.1} parent=1 // loop_header
      %s16 = sphi 0, %s20
      %p17 = scmp.ge.s32.totalorder %s16, 4
      %s26 = sphi 0, %s28
      %s29 = sphi 0, %s26
      %s30 = sphi 0, %s29
      %s46 = sphi 0, %s30
      %s50 = sphi 0, %s50
      %s52 = sphi 0, %s50
      %s53 = sphi 0, %s52
      %s67 = sphi 0, %s53
      %s71 = sphi 0, %s71
      %s73 = sphi 0, %s71
      %s74 = sphi 0, %s73
      %s88 = sphi 0, %s74
      %s94 = sphi 0, %s96
      %s97 = sphi 0, %s94
      %s98 = sphi 0, %s97
      %s114 = sphi 0, %s98
    $region4: #{tpu_custom_call.1} parent=1 // loop_header_branch
      %19 = sbr.rel (%p17) target = $region8
    $region5: #{tpu_custom_call.1} parent=1 // loop_body
      %s21 = ssub.s32 %s16, 1
      %s22 = ssub.s32 %s16, 2
      %s23 = sadd.s32 %s16, 1
      %s24 = ssub.s32 %s16, %s23
      %p25 = scmp.eq.s32.totalorder %s24, 0
      %s27 = sadd.s32 %s26, 1
      %s28 = scalar_select %p25, %s26, %s27
      %p31 = pneg %p25
      %p32 = scmp.eq.s32.totalorder %s16, 1
      %p33 = por %p31, %p32
      %p34 = scmp.ne.s32.totalorder %s26, %s29
      %p35 = scmp.eq.s32.totalorder %s16, 0
      %p36 = por %p34, %p35
      %p37 = scmp.ne.s32.totalorder %s26, %s29
      %p38 = scmp.eq.s32.totalorder %s21, 1
      %p39 = por %p37, %p38
      %p40 = scmp.ne.s32.totalorder %s29, %s30
      %p41 = scmp.eq.s32.totalorder %s21, 0
      %p42 = por %p40, %p41
      %p43 = scmp.ne.s32.totalorder %s29, %s30
      %p44 = scmp.eq.s32.totalorder %s22, 1
      %p45 = por %p43, %p44
      %p47 = scmp.ne.s32.totalorder %s30, %s46
      %p48 = scmp.eq.s32.totalorder %s22, 0
      %p49 = por %p47, %p48
      %s51 = sadd.s32 %s50, 1
      %p54 = scmp.eq.s32.totalorder %s16, 1
      %p55 = scmp.ne.s32.totalorder %s50, %s52
      %p56 = scmp.eq.s32.totalorder %s16, 0
      %p57 = por %p55, %p56
      %p58 = scmp.ne.s32.totalorder %s50, %s52
      %p59 = scmp.eq.s32.totalorder %s21, 1
      %p60 = por %p58, %p59
      %p61 = scmp.ne.s32.totalorder %s52, %s53
      %p62 = scmp.eq.s32.totalorder %s21, 0
      %p63 = por %p61, %p62
      %p64 = scmp.ne.s32.totalorder %s52, %s53
      %p65 = scmp.eq.s32.totalorder %s22, 1
      %p66 = por %p64, %p65
      %p68 = scmp.ne.s32.totalorder %s53, %s67
      %p69 = scmp.eq.s32.totalorder %s22, 0
      %p70 = por %p68, %p69
      %s72 = sadd.s32 %s71, 1
      %p75 = scmp.eq.s32.totalorder %s16, 1
      %p76 = scmp.ne.s32.totalorder %s71, %s73
      %p77 = scmp.eq.s32.totalorder %s16, 0
      %p78 = por %p76, %p77
      %p79 = scmp.ne.s32.totalorder %s71, %s73
      %p80 = scmp.eq.s32.totalorder %s21, 1
      %p81 = por %p79, %p80
      %p82 = scmp.ne.s32.totalorder %s73, %s74
      %p83 = scmp.eq.s32.totalorder %s21, 0
      %p84 = por %p82, %p83
      %p85 = scmp.ne.s32.totalorder %s73, %s74
      %p86 = scmp.eq.s32.totalorder %s22, 1
      %p87 = por %p85, %p86
      %p89 = scmp.ne.s32.totalorder %s74, %s88
      %p90 = scmp.eq.s32.totalorder %s22, 0
      %p91 = por %p89, %p90
      %s92 = ssub.s32 %s16, %s23
      %p93 = scmp.eq.s32.totalorder %s92, 0
      %s95 = sadd.s32 %s94, 1
      %s96 = scalar_select %p93, %s94, %s95
      %p99 = pneg %p93
      %p100 = scmp.eq.s32.totalorder %s16, 1
      %p101 = por %p99, %p100
      %p102 = scmp.ne.s32.totalorder %s94, %s97
      %p103 = scmp.eq.s32.totalorder %s16, 0
      %p104 = por %p102, %p103
      %p105 = scmp.ne.s32.totalorder %s94, %s97
      %p106 = scmp.eq.s32.totalorder %s21, 1
      %p107 = por %p105, %p106
      %p108 = scmp.ne.s32.totalorder %s97, %s98
      %p109 = scmp.eq.s32.totalorder %s21, 0
      %p110 = por %p108, %p109
      %p111 = scmp.ne.s32.totalorder %s97, %s98
      %p112 = scmp.eq.s32.totalorder %s22, 1
      %p113 = por %p111, %p112
      %p115 = scmp.ne.s32.totalorder %s98, %s114
      %p116 = scmp.eq.s32.totalorder %s22, 0
      %p117 = por %p115, %p116
      %p118 = scmp.le.s32.totalorder 1, %s16
      %p119 = scmp.lt.s32.totalorder %s16, 3
      %p120 = pnand %p118, %p119
      %p121 = pneg %p120
      // Predicated region
      $region9: #{tpu_custom_call.1} parent=5 // pred_check
        _
      $region10: #{tpu_custom_call.1} parent=5 // pred_check_branch
        %123 = sbr.rel (%p120) target = $region12
      $region11: #{tpu_custom_call.1} parent=5 // pred_region
        %s124 = ssub.s32 %s16, 1
        // Predicated region
        $region13: #{tpu_custom_call.1} parent=11 // pred_check
          %p125 = pneg %p63
        $region14: #{tpu_custom_call.1} parent=11 // pred_check_branch
          %127 = sbr.rel (%p125) target = $region16
        $region15: #{tpu_custom_call.1} parent=11 // pred_region
          %s129 = ssub.s32 512, 512
          %130 = vsyncadd [#allocation6], %s129
          %s131 = sshll.u32 [#allocation5], 4
          %s132 = int_to_ptr.vmem [resolvable:$true] %s131
          %137 = dma.hbm_to_vmem [thread:$0]  %s1, 512, %s132, [#allocation6], 128, 128, 8
        $region16: #{tpu_custom_call.1} parent=11 // pred_fallthru
          _
        // Predicated region
        $region17: #{tpu_custom_call.1} parent=11 // pred_check
          %p138 = pneg %p84
        $region18: #{tpu_custom_call.1} parent=11 // pred_check_branch
          %140 = sbr.rel (%p138) target = $region20
        $region19: #{tpu_custom_call.1} parent=11 // pred_region
          %s142 = ssub.s32 16, 16
          %143 = vsyncadd [#allocation6], %s142
          %s145 = sshll.u32 [#allocation7], 4
          %s146 = int_to_ptr.vmem [resolvable:$true] %s145
          %148 = dma.hbm_to_vmem [thread:$0]  %s2, 16, %s146, [#allocation6]
        $region20: #{tpu_custom_call.1} parent=11 // pred_fallthru
          _
      $region12: #{tpu_custom_call.1} parent=5 // pred_fallthru
        _
      %p149 = scmp.lt.s32.totalorder %s16, 2
      // Predicated region
      $region21: #{tpu_custom_call.1} parent=5 // pred_check
        %p150 = pneg %p149
      $region22: #{tpu_custom_call.1} parent=5 // pred_check_branch
        %152 = sbr.rel (%p150) target = $region24
      $region23: #{tpu_custom_call.1} parent=5 // pred_region
        // Predicated region
        $region25: #{tpu_custom_call.1} parent=23 // pred_check
          %p153 = pneg %p36
        $region26: #{tpu_custom_call.1} parent=23 // pred_check_branch
          %155 = sbr.rel (%p153) target = $region28
        $region27: #{tpu_custom_call.1} parent=23 // pred_region
          %s156 = sand.u32 %s26, 1
          %s157 = scalar_lea.sflag [#allocation3], %s156
          %s158 = sand.u32 %s26, 1
          %s159 = smul.addr %s158, 64
          %s160 = scalar_lea.vmem [#allocation2], %s159
          %s161 = smul.u32 8, %s16
          %s163 = ssub.s32 1024, 1024
          %164 = vsyncadd %s157, %s163
          %s165 = smul.addr %s161, 128
          %s166 = scalar_lea.hbm %s0, %s165
          %s167 = sshll.u32 %s160, 4
          %s168 = int_to_ptr.vmem [resolvable:$true] %s167
          %173 = dma.hbm_to_vmem [thread:$0]  %s166, 1024, %s168, %s157, 128, 128, 8
        $region28: #{tpu_custom_call.1} parent=23 // pred_fallthru
          _
      $region24: #{tpu_custom_call.1} parent=5 // pred_fallthru
        _
      %p174 = scmp.le.s32.totalorder 1, %s16
      %p175 = scmp.lt.s32.totalorder %s16, 3
      %p176 = pnand %p174, %p175
      %p177 = pneg %p176
      // Predicated region
      $region29: #{tpu_custom_call.1} parent=5 // pred_check
        _
      $region30: #{tpu_custom_call.1} parent=5 // pred_check_branch
        %179 = sbr.rel (%p176) target = $region32
      $region31: #{tpu_custom_call.1} parent=5 // pred_region
        %s180 = ssub.s32 %s16, 1
        %s181 = sand.u32 %s29, 1
        %s182 = scalar_lea.sflag [#allocation3], %s181
        %s183 = sand.u32 %s29, 1
        %s184 = smul.addr %s183, 64
        %s185 = scalar_lea.vmem [#allocation2], %s184
        // Predicated region
        $region33: #{tpu_custom_call.1} parent=31 // pred_check
          %p186 = pneg %p42
        $region34: #{tpu_custom_call.1} parent=31 // pred_check_branch
          %188 = sbr.rel (%p186) target = $region36
        $region35: #{tpu_custom_call.1} parent=31 // pred_region
          %189 = dma.done %s182, 1024
        $region36: #{tpu_custom_call.1} parent=31 // pred_fallthru
          _
        // Predicated region
        $region37: #{tpu_custom_call.1} parent=31 // pred_check
          %p190 = pneg %p63
        $region38: #{tpu_custom_call.1} parent=31 // pred_check_branch
          %192 = sbr.rel (%p190) target = $region40
        $region39: #{tpu_custom_call.1} parent=31 // pred_region
          %193 = dma.done [#allocation6], 512
        $region40: #{tpu_custom_call.1} parent=31 // pred_fallthru
          _
        // Predicated region
        $region41: #{tpu_custom_call.1} parent=31 // pred_check
          %p194 = pneg %p84
        $region42: #{tpu_custom_call.1} parent=31 // pred_check_branch
          %196 = sbr.rel (%p194) target = $region44
        $region43: #{tpu_custom_call.1} parent=31 // pred_region
          %197 = dma.done [#allocation6], 16
        $region44: #{tpu_custom_call.1} parent=31 // pred_fallthru
          _
        %s198 = sand.u32 %s29, 1
        %s199 = scalar_lea.sflag [#allocation3], %s198
        %s200 = sand.u32 %s29, 1
        %s201 = smul.addr %s200, 64
        %s202 = scalar_lea.vmem [#allocation2], %s201
        %p203 = pneg %p42
        %p204 = pneg %p39
        %p205 = pneg %p63
        %p206 = pneg %p60
        %p207 = pneg %p84
        %p208 = pneg %p81
        %p209 = pneg %p110
        %p210 = pneg %p107
        %s211 = sand.u32 %s97, 1
        %s212 = scalar_lea.sflag [#allocation4], %s211
        %s213 = sand.u32 %s97, 1
        %s214 = smul.addr %s213, 64
        %s215 = scalar_lea.vmem [#allocation8], %s214
        %s216 = smul.u32 8, %s21
        %s217 = smul.u32 8, %s21
        %v218 = vld [vmem:[%s185] sm:$0xff]
        %v219 = vld [vmem:[%s185 + $0x8] sm:$0xff]
        %v220 = vld [vmem:[%s185 + $0x10] sm:$0xff]
        %v221 = vld [vmem:[%s185 + $0x18] sm:$0xff]
        %v222 = vld [vmem:[%s185 + $0x20] sm:$0xff]
        %v223 = vld [vmem:[%s185 + $0x28] sm:$0xff]
        %v224 = vld [vmem:[%s185 + $0x30] sm:$0xff]
        %v225 = vld [vmem:[%s185 + $0x38] sm:$0xff]
        %v226 = vld [vmem:[#allocation5] sm:$0xff]
        %v227 = vld [vmem:[#allocation5 + $0x8] sm:$0xff]
        %v228 = vld [vmem:[#allocation5 + $0x10] sm:$0xff]
        %v229 = vld [vmem:[#allocation5 + $0x18] sm:$0xff]
        %v230 = vld [vmem:[#allocation7] sm:$0x1]
        %v232 = vlaneseq
        %v233 = vshrl.u32 %v232, 7
        %v234 = vsub.s32 0, %v233
        %v235 = vrot.slane %v230, %v234
        %vm237 = vcmask 261120
        %v239 = vsel %vm237, %v218, 0
        %v242 = vsel %vm237, %v219, 0
        %v245 = vsel %vm237, %v220, 0
        %v248 = vsel %vm237, %v221, 0
        %v251 = vsel %vm237, %v222, 0
        %v254 = vsel %vm237, %v223, 0
        %v257 = vsel %vm237, %v224, 0
        %v260 = vsel %vm237, %v225, 0
        %262 = vmatprep.subr.mxu0 0.0
        %263 = vmatpush1.msra.mxu0 %v226
        %264 = vmatprep.subr.mxu0 0.0
        %265 = vmatpush1.msra.mxu0 %v227
        %266 = vmatprep.subr.mxu0 0.0
        %267 = vmatpush1.msra.mxu0 %v228
        %268 = vmatprep.subr.mxu0 0.0
        %269 = vmatpush1.msra.mxu0 %v229
        %270 = vmatprep.subr.mxu0 0.0
        %271 = vmatpush1.msra.mxu0 0.0
        %272 = vmatprep.subr.mxu0 0.0
        %273 = vmatpush1.msra.mxu0 0.0
        %274 = vmatprep.subr.mxu0 0.0
        %275 = vmatpush1.msra.mxu0 0.0
        %276 = vmatprep.subr.mxu0 0.0
        %277 = vmatpush1.msra.mxu0 0.0
        %278 = vmatprep.subr.mxu0 0.0
        %279 = vmatpush1.msra.mxu0 0.0
        %280 = vmatprep.subr.mxu0 0.0
        %281 = vmatpush1.msra.mxu0 0.0
        %282 = vmatprep.subr.mxu0 0.0
        %283 = vmatpush1.msra.mxu0 0.0
        %284 = vmatprep.subr.mxu0 0.0
        %285 = vmatpush1.msra.mxu0 0.0
        %286 = vmatprep.subr.mxu0 0.0
        %287 = vmatpush1.msra.mxu0 0.0
        %288 = vmatprep.subr.mxu0 0.0
        %289 = vmatpush1.msra.mxu0 0.0
        %290 = vmatprep.subr.mxu0 0.0
        %291 = vmatpush1.msra.mxu0 0.0
        %292 = vmatprep.subr.mxu0 0.0
        %293 = vmatpush1.msra.mxu0 0.0
        %294 = vmatprep.subr.mxu0 0.0
        %295 = vmatpush1.msra.mxu0 0.0
        %296 = vmatprep.subr.mxu0 0.0
        %297 = vmatpush1.msra.mxu0 0.0
        %298 = vmatprep.subr.mxu0 0.0
        %299 = vmatpush1.msra.mxu0 0.0
        %300 = vmatprep.subr.mxu0 0.0
        %301 = vmatpush1.msra.mxu0 0.0
        %302 = vmatprep.subr.mxu0 0.0
        %303 = vmatpush1.msra.mxu0 0.0
        %304 = vmatprep.subr.mxu0 0.0
        %305 = vmatpush1.msra.mxu0 0.0
        %306 = vmatprep.subr.mxu0 0.0
        %307 = vmatpush1.msra.mxu0 0.0
        %308 = vmatprep.subr.mxu0 0.0
        %309 = vmatpush1.msra.mxu0 0.0
        %310 = vmatprep.subr.mxu0 0.0
        %311 = vmatpush1.msra.mxu0 0.0
        %312 = vmatprep.subr.mxu0 0.0
        %313 = vmatpush1.msra.mxu0 0.0
        %314 = vmatprep.subr.mxu0 0.0
        %315 = vmatpush1.msra.mxu0 0.0
        %316 = vmatprep.subr.mxu0 0.0
        %317 = vmatpush1.msra.mxu0 0.0
        %318 = vmatprep.subr.mxu0 0.0
        %319 = vmatpush1.msra.mxu0 0.0
        %320 = vmatprep.subr.mxu0 0.0
        %321 = vmatpush1.msra.mxu0 0.0
        %322 = vmatprep.subr.mxu0 0.0
        %323 = vmatpush1.msra.mxu0 0.0
        %324 = vmatprep.subr.mxu0 0.0
        %325 = vmatpush1.msra.mxu0 0.0
        %326 = vmatprep.mubr.f32.mxu0 0.0
        %327 = vmatmul.mubr.f32.gmra.mrb[0].mxu0 %v239
        %v328 = vpop.f32.mrb[0].mxu0
        %v329 = vadd.f32 %v235, %v328
        %v330 = vpop.f32.mrb[0].mxu0
        %331 = vmatprep.mubr.f32.mxu0 0.0
        %332 = vmatmul.mubr.f32.gmra.mrb[0].mxu0 %v242
        %v333 = vpop.f32.mrb[0].mxu0
        %v334 = vadd.f32 %v235, %v333
        %v335 = vpop.f32.mrb[0].mxu0
        %336 = vmatprep.mubr.f32.mxu0 0.0
        %337 = vmatmul.mubr.f32.gmra.mrb[0].mxu0 %v245
        %v338 = vpop.f32.mrb[0].mxu0
        %v339 = vadd.f32 %v235, %v338
        %v340 = vpop.f32.mrb[0].mxu0
        %341 = vmatprep.mubr.f32.mxu0 0.0
        %342 = vmatmul.mubr.f32.gmra.mrb[0].mxu0 %v248
        %v343 = vpop.f32.mrb[0].mxu0
        %v344 = vadd.f32 %v235, %v343
        %v345 = vpop.f32.mrb[0].mxu0
        %346 = vmatprep.mubr.f32.mxu0 0.0
        %347 = vmatmul.mubr.f32.gmra.mrb[0].mxu0 %v251
        %v348 = vpop.f32.mrb[0].mxu0
        %v349 = vadd.f32 %v235, %v348
        %v350 = vpop.f32.mrb[0].mxu0
        %351 = vmatprep.mubr.f32.mxu0 0.0
        %352 = vmatmul.mubr.f32.gmra.mrb[0].mxu0 %v254
        %v353 = vpop.f32.mrb[0].mxu0
        %v354 = vadd.f32 %v235, %v353
        %v355 = vpop.f32.mrb[0].mxu0
        %356 = vmatprep.mubr.f32.mxu0 0.0
        %357 = vmatmul.mubr.f32.gmra.mrb[0].mxu0 %v257
        %v358 = vpop.f32.mrb[0].mxu0
        %v359 = vadd.f32 %v235, %v358
        %v360 = vpop.f32.mrb[0].mxu0
        %361 = vmatprep.mubr.f32.mxu0 0.0
        %362 = vmatmul.mubr.f32.gmra.mrb[0].mxu0 %v260
        %v363 = vpop.f32.mrb[0].mxu0
        %v364 = vadd.f32 %v235, %v363
        %v365 = vpop.f32.mrb[0].mxu0
        %366 = vdwg.mxu0
        %367 = vst.msk [vmem:[%s215] sm:$0xff] %vm237, %v329
        %368 = vst.msk [vmem:[%s215 + $0x8] sm:$0xff] %vm237, %v334
        %369 = vst.msk [vmem:[%s215 + $0x10] sm:$0xff] %vm237, %v339
        %370 = vst.msk [vmem:[%s215 + $0x18] sm:$0xff] %vm237, %v344
        %371 = vst.msk [vmem:[%s215 + $0x20] sm:$0xff] %vm237, %v349
        %372 = vst.msk [vmem:[%s215 + $0x28] sm:$0xff] %vm237, %v354
        %373 = vst.msk [vmem:[%s215 + $0x30] sm:$0xff] %vm237, %v359
        %374 = vst.msk [vmem:[%s215 + $0x38] sm:$0xff] %vm237, %v364
        %s375 = sand.u32 %s97, 1
        %s376 = scalar_lea.sflag [#allocation4], %s375
        %s377 = sand.u32 %s97, 1
        %s378 = smul.addr %s377, 64
        %s379 = scalar_lea.vmem [#allocation8], %s378
        // Predicated region
        $region45: #{tpu_custom_call.1} parent=31 // pred_check
          %p380 = pneg %p107
        $region46: #{tpu_custom_call.1} parent=31 // pred_check_branch
          %382 = sbr.rel (%p380) target = $region48
        $region47: #{tpu_custom_call.1} parent=31 // pred_region
          %s383 = smul.u32 8, %s21
          %s385 = ssub.s32 1024, 1024
          %386 = vsyncadd %s376, %s385
          %s387 = smul.addr %s383, 128
          %s388 = scalar_lea.hbm %s3, %s387
          %s389 = sshll.u32 %s379, 4
          %s390 = int_to_ptr.vmem [resolvable:$true] %s389
          %395 = dma.vmem_to_hbm [thread:$0]  %s390, 1024, %s388, %s376, 128, 128, 8
        $region48: #{tpu_custom_call.1} parent=31 // pred_fallthru
          _
      $region32: #{tpu_custom_call.1} parent=5 // pred_fallthru
        _
      %p396 = scmp.le.s32.totalorder 2, %s16
      // Predicated region
      $region49: #{tpu_custom_call.1} parent=5 // pred_check
        %p397 = pneg %p396
      $region50: #{tpu_custom_call.1} parent=5 // pred_check_branch
        %399 = sbr.rel (%p397) target = $region52
      $region51: #{tpu_custom_call.1} parent=5 // pred_region
        %s400 = ssub.s32 %s16, 2
        // Predicated region
        $region53: #{tpu_custom_call.1} parent=51 // pred_check
          %p401 = pneg %p113
        $region54: #{tpu_custom_call.1} parent=51 // pred_check_branch
          %403 = sbr.rel (%p401) target = $region56
        $region55: #{tpu_custom_call.1} parent=51 // pred_region
          %s404 = sand.u32 %s98, 1
          %s405 = scalar_lea.sflag [#allocation4], %s404
          %s406 = sand.u32 %s98, 1
          %s407 = smul.addr %s406, 64
          %s408 = scalar_lea.vmem [#allocation8], %s407
          %409 = dma.done %s405, 1024
        $region56: #{tpu_custom_call.1} parent=51 // pred_fallthru
          _
      $region52: #{tpu_custom_call.1} parent=5 // pred_fallthru
        _
    $region6: #{tpu_custom_call.1} parent=1 // loop_footer
      %s20 = sadd.s32 1, %s16
    $region7: #{tpu_custom_call.1} parent=1 // loop_footer_branch
      %15 = sbr.rel target = $region3
    $region8: #{tpu_custom_call.1} parent=1 // loop_exit
      _
    %410 = vsyncpa [#allocation3], 1
    %s411 = scalar_lea.sflag [#allocation3], 1
    %412 = vsyncpa %s411, 1
    %413 = vsyncpa [#allocation6], 1
    %414 = vsyncpa [#allocation4], 1
    %s415 = scalar_lea.sflag [#allocation4], 1
    %416 = vsyncpa %s415, 1

</llo_original>
